<compile_context>
chip_gen: v6e
topology: v6e:2x2x1
jax: 0.10.0
libtpu: 0.0.40
codegen_flags: <defaults>
</compile_context>

<pallas_src>
import jax
import jax.numpy as jnp
from jax.experimental import pallas as pl
from jax.experimental.pallas import tpu as pltpu


def residual_block_kernel(a_ref, z_ref, x_ref, dinv_ref, bg_ref, wl_ref,
                          o_ref, acc_ref):
    # a_ref    : (tm, tk)  int8 adjacency block (A + remaining self loops)
    # z_ref    : (tk, Fp)  D^-1/2 (X @ W_gcn) column block   [matmul dtype]
    # x_ref    : (tm, Fp)  residual rows of X                [f32]
    # dinv_ref : (tm, 1)   D^-1/2 for this row tile          [f32]
    # bg_ref   : (1, Fp)   GCN bias                          [f32]
    # wl_ref   : (Fp, Fp)  Linear weight, pre-transposed     [matmul dtype]
    # o_ref    : (tm, Fp)  output row tile                   [f32]
    # acc_ref  : (tm, Fp)  f32 accumulator scratch for A @ z
    k = pl.program_id(1)

    @pl.when(k == 0)
    def _():
        acc_ref[...] = jnp.zeros_like(acc_ref)

    # int8 adjacency is upcast to the matmul dtype right before the MXU op
    # (v7x has no integer MXU, so never feed int8 directly).
    a = a_ref[...].astype(z_ref.dtype)
    acc_ref[...] += jnp.dot(a, z_ref[...], preferred_element_type=jnp.float32)

    @pl.when(k == pl.num_programs(1) - 1)
    def _():
        # Epilogue: row-side normalization + bias + ReLU, linear, residual, ReLU.
        h = dinv_ref[...] * acc_ref[...] + bg_ref[...]
        h = jnp.maximum(h, 0.0)
        h = jnp.dot(h.astype(wl_ref.dtype), wl_ref[...],
                    preferred_element_type=jnp.float32)
        o_ref[...] = jnp.maximum(h + x_ref[...], 0.0)


def _round_up(v, m):
    return ((v + m - 1) // m) * m


def _vmem_limit_bytes():
    """Generation-aware scoped-VMEM limit (v5e/v6e: 128 MiB phys, v7x: 64 MiB)."""
    cap = 64 * 1024 * 1024  # conservative default = v7x per-TC VMEM
    try:
        info = pltpu.get_tpu_info()
        c = getattr(info, "vmem_capacity_bytes", None)
        if c:
            cap = int(c)
    except Exception:
        pass
    return max(32 * 1024 * 1024,
               min(cap * 3 // 4, cap - 8 * 1024 * 1024))


def _choose_tiles(N, Fp, z_itemsize, budget_bytes):
    """Pick (tm, tk): row tile of A/output and column tile of A (= rows of z)."""
    if N <= 64:
        tm = _round_up(N, 8)
    else:
        tm = min(512, _round_up(N, 32))
        # Keep >= 2 row tiles so megacore sharding (v7x, 2 TCs) has work on both.
        tm = min(tm, _round_up(-(-N // 2), 32))
    tk = min(8192, _round_up(N, 128))

    def estimate(tm_, tk_):
        return (2 * tm_ * tk_                      # A slab, int8, double-buffered
                + 2 * tk_ * Fp * z_itemsize        # z column block, double-buffered
                + 2 * tm_ * Fp * 4                 # residual X rows (f32)
                + 2 * tm_ * 128 * 4                # dinv (lane-padded)
                + 8 * Fp * 4                       # bias (single buffer)
                + Fp * Fp * z_itemsize             # W_ln^T (single buffer)
                + 2 * tm_ * Fp * 4                 # output tile, double-buffered
                + tm_ * Fp * 4)                    # f32 accumulator scratch

    while estimate(tm, tk) > budget_bytes:
        if tk > 512:
            tk //= 2
        elif tm > 64:
            tm = max(64, _round_up(tm // 2, 32))
        else:
            break
    return tm, tk


def residual_block(x, edge_index, w_gcn, b_gcn, w_ln, *,
                   matmul_dtype=jnp.bfloat16):
    """x: (N, F) f32, edge_index: (2, E) int32, w_gcn: (F, F) (in x out),
    b_gcn: (F,), w_ln: (F, F) torch layout (out x in)."""
    N, F = x.shape
    f32 = jnp.float32

    # ---- XLA glue: adjacency with *remaining* self loops (PyG gcn_norm) ----
    src, dst = edge_index[0], edge_index[1]
    A = jnp.zeros((N, N), f32).at[dst, src].add(1.0)
    diag = jnp.diagonal(A)
    A = A + jnp.diag(jnp.where(diag > 0.0, 0.0, 1.0))  # add self loop only if missing
    deg = A.sum(axis=1)
    dinv = jnp.where(deg > 0, jax.lax.rsqrt(deg), 0.0)

    # ---- hoist the grid-invariant dense work: z = D^-1/2 (X @ W_gcn), once ----
    z = dinv[:, None] * (x @ w_gcn)                      # (N, F) f32, plain XLA

    # ---- lane-dense feature padding + generation-aware tiling ----
    Fp = _round_up(max(F, 128), 128)
    z_itemsize = jnp.dtype(matmul_dtype).itemsize
    vmem_limit = _vmem_limit_bytes()
    tm, tk = _choose_tiles(N, Fp, z_itemsize, vmem_limit - 8 * 1024 * 1024)
    Nr = _round_up(N, tm)
    Nc = _round_up(N, tk)

    def pad2(a, r, c, dt):
        return jnp.pad(a, ((0, r - a.shape[0]), (0, c - a.shape[1]))).astype(dt)

    a_p = pad2(A, Nr, Nc, jnp.int8)            # exact small counts -> int8 HBM stream
    z_p = pad2(z, Nc, Fp, matmul_dtype)
    x_p = pad2(x, Nr, Fp, f32)                 # residual rows stay exact f32
    wl_p = pad2(w_ln.T, Fp, Fp, matmul_dtype)  # pre-transpose: kernel does h @ wl
    bg_p = jnp.pad(b_gcn, (0, Fp - F)).reshape(1, Fp).astype(f32)
    dinv_p = jnp.pad(dinv, (0, Nr - N)).reshape(Nr, 1).astype(f32)

    grid_spec = pltpu.PrefetchScalarGridSpec(
        num_scalar_prefetch=0,
        grid=(Nr // tm, Nc // tk),
        in_specs=[
            pl.BlockSpec((tm, tk), lambda i, k: (i, k)),      # A block (pipelined)
            pl.BlockSpec((tk, Fp), lambda i, k: (k, 0)),      # z column block
            pl.BlockSpec((tm, Fp), lambda i, k: (i, 0)),      # residual X rows (f32)
            pl.BlockSpec((tm, 1), lambda i, k: (i, 0)),       # D^-1/2 rows
            pl.BlockSpec((1, Fp), lambda i, k: (0, 0),
                         pipeline_mode=pl.Buffered(1)),       # bias (single buffer)
            pl.BlockSpec((Fp, Fp), lambda i, k: (0, 0),
                         pipeline_mode=pl.Buffered(1)),       # W_ln^T (single buffer)
        ],
        out_specs=pl.BlockSpec((tm, Fp), lambda i, k: (i, 0)),
        scratch_shapes=[pltpu.VMEM((tm, Fp), jnp.float32)],
    )

    out_p = pl.pallas_call(
        residual_block_kernel,
        out_shape=jax.ShapeDtypeStruct((Nr, Fp), f32),
        grid_spec=grid_spec,
        compiler_params=pltpu.CompilerParams(
            dimension_semantics=("parallel", "arbitrary"),
            vmem_limit_bytes=vmem_limit,
        ),
    )(a_p, z_p, x_p, dinv_p, bg_p, wl_p)

    return out_p[:N, :F]


def reference(x, edge_index, w_gcn, b_gcn, w_ln):
    N, F = x.shape
    src, dst = edge_index[0], edge_index[1]
    A = jnp.zeros((N, N), jnp.float32).at[dst, src].add(1.0)
    diag = jnp.diagonal(A)
    A = A + jnp.diag(jnp.where(diag > 0.0, 0.0, 1.0))
    deg = A.sum(axis=1)
    dinv = jnp.where(deg > 0, jax.lax.rsqrt(deg), 0.0)
    a_hat = dinv[:, None] * A * dinv[None, :]
    out = a_hat @ (x @ w_gcn) + b_gcn[None, :]
    out = jnp.maximum(out, 0.0)
    out = out @ w_ln.T
    out = jnp.maximum(out + x, 0.0)
    return out


if __name__ == "__main__":
    key = jax.random.PRNGKey(0)
    N = 8            # number of graph nodes
    F = 32           # outfeature

    k1, k2, k3 = jax.random.split(key, 3)

    # node features
    x = jax.random.normal(k1, (N, F), dtype=jnp.float32)

    # small deterministic edge list (symmetric ring + a chord), shape (2, E)
    src = jnp.array([0, 1, 1, 2, 2, 3, 3, 4, 4, 5, 5, 6, 6, 7, 7, 0, 0, 4],
                    dtype=jnp.int32)
    dst = jnp.array([1, 0, 2, 1, 3, 2, 4, 3, 5, 4, 6, 5, 7, 6, 0, 7, 4, 0],
                    dtype=jnp.int32)
    edge_index = jnp.stack([src, dst], axis=0)

    # GCNConv weight: xavier_uniform_ (as in init_weights)
    limit = (6.0 / (F + F)) ** 0.5
    w_gcn = jax.random.uniform(k2, (F, F), jnp.float32, -limit, limit)
    # GCNConv bias: zeros (PyG default reset)
    b_gcn = jnp.zeros((F,), jnp.float32)
    # Linear(outfeature, outfeature, bias=False): uniform(-1/sqrt(F), 1/sqrt(F))
    bound = 1.0 / (F ** 0.5)
    w_ln = jax.random.uniform(k3, (F, F), jnp.float32, -bound, bound)

    ref = reference(x, edge_index, w_gcn, b_gcn, w_ln)

    # f32 MXU-operand path — tight match against the reference.
    out_f32 = residual_block(x, edge_index, w_gcn, b_gcn, w_ln,
                             matmul_dtype=jnp.float32)
    out_f32 = jax.block_until_ready(out_f32)
    assert out_f32.shape == (N, F)
    assert jnp.allclose(out_f32, ref, atol=1e-4, rtol=1e-4)

    # bf16 MXU-operand path (v6e/v7x native); A stays int8 in HBM, residual f32.
    out_bf16 = residual_block(x, edge_index, w_gcn, b_gcn, w_ln,
                              matmul_dtype=jnp.bfloat16)
    out_bf16 = jax.block_until_ready(out_bf16)
    assert out_bf16.shape == (N, F)
    assert jnp.allclose(out_bf16, ref, atol=5e-2, rtol=5e-2)

    print("KERNEL_OK")
</pallas_src>

<mosaic_0001>
module attributes {stable_mosaic.version = 11 : i64} {
  func.func @residual_block_kernel(%arg0: i32, %arg1: i32, %arg2: memref<8x128xi8, #tpu.memory_space<vmem>>, %arg3: memref<128x128xf32, #tpu.memory_space<vmem>>, %arg4: memref<8x128xf32, #tpu.memory_space<vmem>>, %arg5: memref<8x1xf32, #tpu.memory_space<vmem>>, %arg6: memref<1x128xf32, #tpu.memory_space<vmem>>, %arg7: memref<128x128xf32, #tpu.memory_space<vmem>>, %arg8: memref<8x128xf32, #tpu.memory_space<vmem>>, %arg9: memref<8x128xf32, #tpu.memory_space<vmem>>) attributes {dimension_semantics = [#tpu.dimension_semantics<parallel>, #tpu.dimension_semantics<arbitrary>], iteration_bounds = array<i64: 1, 1>, scalar_prefetch = 0 : i64, scratch_operands = 1 : i64, tpu.core_type = #tpu.core_type<tc>, window_params = [{transform_indices = @transform_0, window_bounds = array<i64: 8, 128>}, {transform_indices = @transform_1, window_bounds = array<i64: 128, 128>}, {transform_indices = @transform_2, window_bounds = array<i64: 8, 128>}, {transform_indices = @transform_3, window_bounds = array<i64: 8, 1>}, {pipeline_mode = #tpu.pipeline_mode<synchronous>, transform_indices = @transform_4, window_bounds = array<i64: 1, 128>}, {pipeline_mode = #tpu.pipeline_mode<synchronous>, transform_indices = @transform_5, window_bounds = array<i64: 128, 128>}, {transform_indices = @transform_6, window_bounds = array<i64: 8, 128>}]} {
    %c0_i32 = arith.constant 0 : i32
    %0 = arith.cmpi eq, %arg1, %c0_i32 : i32
    %1 = arith.extui %0 : i1 to i32
    %c0_i32_0 = arith.constant 0 : i32
    %2 = arith.cmpi ne, %1, %c0_i32_0 : i32
    scf.if %2 {
      %cst_10 = arith.constant 0.000000e+00 : f32
      %13 = vector.broadcast %cst_10 : f32 to vector<8x128xf32>
      %c0_11 = arith.constant 0 : index
      %c0_12 = arith.constant 0 : index
      %14 = vector.load %arg9[%c0_11, %c0_12] : memref<8x128xf32, #tpu.memory_space<vmem>>, vector<8x128xf32>
      tpu.vector_store %arg9[%c0_11, %c0_12], %13 {strides = array<i32>} : memref<8x128xf32, #tpu.memory_space<vmem>>, vector<8x128xf32>,
    } else {
    }
    %c0 = arith.constant 0 : index
    %c0_1 = arith.constant 0 : index
    %3 = vector.load %arg2[%c0, %c0_1] : memref<8x128xi8, #tpu.memory_space<vmem>>, vector<8x128xi8>
    %4 = arith.sitofp %3 : vector<8x128xi8> to vector<8x128xf32>
    %c0_2 = arith.constant 0 : index
    %c0_3 = arith.constant 0 : index
    %5 = vector.load %arg9[%c0_2, %c0_3] : memref<8x128xf32, #tpu.memory_space<vmem>>, vector<8x128xf32>
    %c0_4 = arith.constant 0 : index
    %c0_5 = arith.constant 0 : index
    %6 = vector.load %arg3[%c0_4, %c0_5] : memref<128x128xf32, #tpu.memory_space<vmem>>, vector<128x128xf32>
    %cst = arith.constant dense<0.000000e+00> : vector<8x128xf32>
    %7 = tpu.matmul %4, %6, %cst {dimension_numbers = #tpu.dot_dimension_numbers<[1], [0], [0], [1], [0, 0, 1, 1], [], []>} : vector<8x128xf32>, vector<128x128xf32>, vector<8x128xf32> -> vector<8x128xf32>
    %8 = arith.addf %5, %7 : vector<8x128xf32>
    %c0_6 = arith.constant 0 : index
    %c0_7 = arith.constant 0 : index
    %9 = vector.load %arg9[%c0_6, %c0_7] : memref<8x128xf32, #tpu.memory_space<vmem>>, vector<8x128xf32>
    tpu.vector_store %arg9[%c0_6, %c0_7], %8 {strides = array<i32>} : memref<8x128xf32, #tpu.memory_space<vmem>>, vector<8x128xf32>,
    %c0_i32_8 = arith.constant 0 : i32
    %10 = arith.cmpi eq, %arg1, %c0_i32_8 : i32
    %11 = arith.extui %10 : i1 to i32
    %c0_i32_9 = arith.constant 0 : i32
    %12 = arith.cmpi ne, %11, %c0_i32_9 : i32
    scf.if %12 {
      %c0_10 = arith.constant 0 : index
      %c0_11 = arith.constant 0 : index
      %13 = vector.load %arg5[%c0_10, %c0_11] : memref<8x1xf32, #tpu.memory_space<vmem>>, vector<8x1xf32>
      %c0_12 = arith.constant 0 : index
      %c0_13 = arith.constant 0 : index
      %14 = vector.load %arg9[%c0_12, %c0_13] : memref<8x128xf32, #tpu.memory_space<vmem>>, vector<8x128xf32>
      %15 = vector.broadcast %13 : vector<8x1xf32> to vector<8x128xf32>
      %16 = arith.mulf %15, %14 : vector<8x128xf32>
      %c0_14 = arith.constant 0 : index
      %c0_15 = arith.constant 0 : index
      %17 = vector.load %arg6[%c0_14, %c0_15] : memref<1x128xf32, #tpu.memory_space<vmem>>, vector<1x128xf32>
      %18 = vector.broadcast %17 : vector<1x128xf32> to vector<8x128xf32>
      %19 = arith.addf %16, %18 : vector<8x128xf32>
      %cst_16 = arith.constant 0.000000e+00 : f32
      %20 = vector.broadcast %cst_16 : f32 to vector<8x128xf32>
      %21 = arith.maximumf %19, %20 : vector<8x128xf32>
      %c0_17 = arith.constant 0 : index
      %c0_18 = arith.constant 0 : index
      %22 = vector.load %arg7[%c0_17, %c0_18] : memref<128x128xf32, #tpu.memory_space<vmem>>, vector<128x128xf32>
      %cst_19 = arith.constant dense<0.000000e+00> : vector<8x128xf32>
      %23 = tpu.matmul %21, %22, %cst_19 {dimension_numbers = #tpu.dot_dimension_numbers<[1], [0], [0], [1], [0, 0, 1, 1], [], []>} : vector<8x128xf32>, vector<128x128xf32>, vector<8x128xf32> -> vector<8x128xf32>
      %c0_20 = arith.constant 0 : index
      %c0_21 = arith.constant 0 : index
      %24 = vector.load %arg4[%c0_20, %c0_21] : memref<8x128xf32, #tpu.memory_space<vmem>>, vector<8x128xf32>
      %25 = arith.addf %23, %24 : vector<8x128xf32>
      %cst_22 = arith.constant 0.000000e+00 : f32
      %26 = vector.broadcast %cst_22 : f32 to vector<8x128xf32>
      %27 = arith.maximumf %25, %26 : vector<8x128xf32>
      %c0_23 = arith.constant 0 : index
      %c0_24 = arith.constant 0 : index
      %28 = vector.load %arg8[%c0_23, %c0_24] : memref<8x128xf32, #tpu.memory_space<vmem>>, vector<8x128xf32>
      tpu.vector_store %arg8[%c0_23, %c0_24], %27 {strides = array<i32>} : memref<8x128xf32, #tpu.memory_space<vmem>>, vector<8x128xf32>,
    } else {
    }
    return
  }
  func.func @transform_0(%arg0: i32, %arg1: i32) -> (i32, i32) {
    %c0_i32 = arith.constant 0 : i32
    return %arg0, %arg1 : i32, i32
  }
  func.func @transform_1(%arg0: i32, %arg1: i32) -> (i32, i32) {
    %c0_i32 = arith.constant 0 : i32
    %c0_i32_0 = arith.constant 0 : i32
    return %arg1, %c0_i32 : i32, i32
  }
  func.func @transform_2(%arg0: i32, %arg1: i32) -> (i32, i32) {
    %c0_i32 = arith.constant 0 : i32
    %c0_i32_0 = arith.constant 0 : i32
    return %arg0, %c0_i32 : i32, i32
  }
  func.func @transform_3(%arg0: i32, %arg1: i32) -> (i32, i32) {
    %c0_i32 = arith.constant 0 : i32
    %c0_i32_0 = arith.constant 0 : i32
    return %arg0, %c0_i32 : i32, i32
  }
  func.func @transform_4(%arg0: i32, %arg1: i32) -> (i32, i32) {
    %c0_i32 = arith.constant 0 : i32
    %c0_i32_0 = arith.constant 0 : i32
    %c0_i32_1 = arith.constant 0 : i32
    return %c0_i32, %c0_i32_0 : i32, i32
  }
  func.func @transform_5(%arg0: i32, %arg1: i32) -> (i32, i32) {
    %c0_i32 = arith.constant 0 : i32
    %c0_i32_0 = arith.constant 0 : i32
    %c0_i32_1 = arith.constant 0 : i32
    return %c0_i32, %c0_i32_0 : i32, i32
  }
  func.func @transform_6(%arg0: i32, %arg1: i32) -> (i32, i32) {
    %c0_i32 = arith.constant 0 : i32
    %c0_i32_0 = arith.constant 0 : i32
    return %arg0, %c0_i32 : i32, i32
  }
}

</mosaic_0001>

<llo_original>
// kernel: tpu_custom_call.1
$region0: #{tpu_custom_call.1}
  #allocation0 [shape = 'u32[]', space=smem, size = 0x4, offset = 0x4, fixed_abs, tag = 'smem constant byte address 0x4 - core index']
  #allocation1 [shape = 'u32[144,128]{1,0:T(1,128)}', space=vmem, size = 0x12000, scoped, tag = 'internal scratch']
  #allocation2 [shape = 'f32[8,128]{1,0:T(8,128)}', space=vmem, size = 0x1000, scoped, tag = 'scratch operand']
  %s0 = inlined_call_operand.vmem [shape: s8[8,128], index: 0, kind: input, shape index: {}]
  %s1 = inlined_call_operand.hbm [shape: f32[128,128], index: 1, kind: input, shape index: {}]
  %s2 = inlined_call_operand.vmem [shape: f32[8,128], index: 2, kind: input, shape index: {}]
  %s3 = inlined_call_operand.vmem [shape: f32[8,1], index: 3, kind: input, shape index: {}]
  %s4 = inlined_call_operand.vmem [shape: f32[1,128], index: 4, kind: input, shape index: {}]
  %s5 = inlined_call_operand.hbm [shape: f32[128,128], index: 5, kind: input, shape index: {}]
  %s6 = inlined_call_operand.hbm [shape: f32[8,128], index: 6, kind: output, shape index: {}]
  %s7 = sld [smem:[#allocation0]]
  $region50: #{tpu_custom_call.1} parent=0
    _
  %s9 = ssub.s32 1, %s7
  %s10 = scalar_select 0, %s9, %s7
  $region1: #{tpu_custom_call.1} parent=0
    #allocation3 [shape = 'u8[65536]{0}', space=vmem, size = 0x10000, scoped, tag = 'input window, operand 1, single buffered']
    #allocation4 [shape = 's32[1]{0}', space=sflag, size = 0x4, scoped, tag = 'scoped memory for tpu_custom_call.1']
    #allocation5 [shape = 's32[1]{0}', space=sflag, size = 0x4, scoped, tag = 'scoped memory for tpu_custom_call.1']
    #allocation6 [shape = 'u8[65536]{0}', space=vmem, size = 0x10000, scoped, tag = 'input window, operand 5, single buffered']
    #allocation7 [shape = 's32[1]{0}', space=sflag, size = 0x4, scoped, tag = 'scoped memory for tpu_custom_call.1']
    #allocation8 [shape = 'u8[4096]{0}', space=vmem, size = 0x1000, scoped, tag = 'output window, operand 0, single buffered']
    %11 = vsyncpa [#allocation4], 0
    %12 = vsyncpa [#allocation7], 0
    %13 = vsyncpa [#allocation5], 0
    // Predicated region
    $region2: #{tpu_custom_call.1} parent=1 // pred_check
      _
    $region3: #{tpu_custom_call.1} parent=1 // pred_check_branch
      %15 = sbr.rel (0) target = $region5
    $region4: #{tpu_custom_call.1} parent=1 // pred_region
      _
    $region5: #{tpu_custom_call.1} parent=1 // pred_fallthru
      _
    // Predicated region
    $region6: #{tpu_custom_call.1} parent=1 // pred_check
      _
    $region7: #{tpu_custom_call.1} parent=1 // pred_check_branch
      %17 = sbr.rel (0) target = $region9
    $region8: #{tpu_custom_call.1} parent=1 // pred_region
      %s19 = ssub.s32 2048, 2048
      %20 = vsyncadd [#allocation4], %s19
      %s21 = sshll.u32 [#allocation3], 4
      %s22 = int_to_ptr.vmem [resolvable:$true] %s21
      %27 = dma.hbm_to_vmem [thread:$0]  %s1, 2048, %s22, [#allocation4], 128, 128, 8
    $region9: #{tpu_custom_call.1} parent=1 // pred_fallthru
      _
    // Predicated region
    $region10: #{tpu_custom_call.1} parent=1 // pred_check
      _
    $region11: #{tpu_custom_call.1} parent=1 // pred_check_branch
      %29 = sbr.rel (0) target = $region13
    $region12: #{tpu_custom_call.1} parent=1 // pred_region
      _
    $region13: #{tpu_custom_call.1} parent=1 // pred_fallthru
      _
    // Predicated region
    $region14: #{tpu_custom_call.1} parent=1 // pred_check
      _
    $region15: #{tpu_custom_call.1} parent=1 // pred_check_branch
      %31 = sbr.rel (0) target = $region17
    $region16: #{tpu_custom_call.1} parent=1 // pred_region
      _
    $region17: #{tpu_custom_call.1} parent=1 // pred_fallthru
      _
    // Predicated region
    $region18: #{tpu_custom_call.1} parent=1 // pred_check
      _
    $region19: #{tpu_custom_call.1} parent=1 // pred_check_branch
      %33 = sbr.rel (0) target = $region21
    $region20: #{tpu_custom_call.1} parent=1 // pred_region
      _
    $region21: #{tpu_custom_call.1} parent=1 // pred_fallthru
      _
    // Predicated region
    $region22: #{tpu_custom_call.1} parent=1 // pred_check
      _
    $region23: #{tpu_custom_call.1} parent=1 // pred_check_branch
      %35 = sbr.rel (0) target = $region25
    $region24: #{tpu_custom_call.1} parent=1 // pred_region
      %s37 = ssub.s32 2048, 2048
      %38 = vsyncadd [#allocation7], %s37
      %s39 = sshll.u32 [#allocation6], 4
      %s40 = int_to_ptr.vmem [resolvable:$true] %s39
      %45 = dma.hbm_to_vmem [thread:$0]  %s5, 2048, %s40, [#allocation7], 128, 128, 8
    $region25: #{tpu_custom_call.1} parent=1 // pred_fallthru
      _
    // Predicated region
    $region26: #{tpu_custom_call.1} parent=1 // pred_check
      _
    $region27: #{tpu_custom_call.1} parent=1 // pred_check_branch
      %47 = sbr.rel (0) target = $region29
    $region28: #{tpu_custom_call.1} parent=1 // pred_region
      %48 = dma.done [#allocation4], 2048
    $region29: #{tpu_custom_call.1} parent=1 // pred_fallthru
      _
    // Predicated region
    $region30: #{tpu_custom_call.1} parent=1 // pred_check
      _
    $region31: #{tpu_custom_call.1} parent=1 // pred_check_branch
      %50 = sbr.rel (0) target = $region33
    $region32: #{tpu_custom_call.1} parent=1 // pred_region
      %51 = dma.done [#allocation7], 2048
    $region33: #{tpu_custom_call.1} parent=1 // pred_fallthru
      _
    %p52 = scmp.eq.s32.totalorder 0, 0
    // Predicated region
    $region34: #{tpu_custom_call.1} parent=1 // pred_check
      %p53 = pneg %p52
    $region35: #{tpu_custom_call.1} parent=1 // pred_check_branch
      %55 = sbr.rel (%p53) target = $region37
    $region36: #{tpu_custom_call.1} parent=1 // pred_region
      %56 = vst [vmem:[#allocation2] sm:$0xff] 0.0
    $region37: #{tpu_custom_call.1} parent=1 // pred_fallthru
      _
    %v57 = vld [vmem:[%s0] sm:$0x3]
    %v58 = vunpack.c.0.s8 %v57
    %v59 = vcvt.s32.f32 %v58
    %v60 = vld [vmem:[#allocation2] sm:$0xff]
    %v61 = vld [vmem:[#allocation3] sm:$0xff]
    %v62 = vld [vmem:[#allocation3 + $0x8] sm:$0xff]
    %v63 = vld [vmem:[#allocation3 + $0x10] sm:$0xff]
    %v64 = vld [vmem:[#allocation3 + $0x18] sm:$0xff]
    %v65 = vld [vmem:[#allocation3 + $0x20] sm:$0xff]
    %v66 = vld [vmem:[#allocation3 + $0x28] sm:$0xff]
    %v67 = vld [vmem:[#allocation3 + $0x30] sm:$0xff]
    %v68 = vld [vmem:[#allocation3 + $0x38] sm:$0xff]
    %v69 = vld [vmem:[#allocation3 + $0x40] sm:$0xff]
    %v70 = vld [vmem:[#allocation3 + $0x48] sm:$0xff]
    %v71 = vld [vmem:[#allocation3 + $0x50] sm:$0xff]
    %v72 = vld [vmem:[#allocation3 + $0x58] sm:$0xff]
    %v73 = vld [vmem:[#allocation3 + $0x60] sm:$0xff]
    %v74 = vld [vmem:[#allocation3 + $0x68] sm:$0xff]
    %v75 = vld [vmem:[#allocation3 + $0x70] sm:$0xff]
    %v76 = vld [vmem:[#allocation3 + $0x78] sm:$0xff]
    %77 = vmatprep.subr.mxu0 0.0
    %78 = vmatpush1.msra.mxu0 %v76
    %79 = vmatprep.subr.mxu0 0.0
    %80 = vmatpush1.msra.mxu0 %v75
    %81 = vmatprep.subr.mxu0 0.0
    %82 = vmatpush1.msra.mxu0 %v74
    %83 = vmatprep.subr.mxu0 0.0
    %84 = vmatpush1.msra.mxu0 %v73
    %85 = vmatprep.subr.mxu0 0.0
    %86 = vmatpush1.msra.mxu0 %v72
    %87 = vmatprep.subr.mxu0 0.0
    %88 = vmatpush1.msra.mxu0 %v71
    %89 = vmatprep.subr.mxu0 0.0
    %90 = vmatpush1.msra.mxu0 %v70
    %91 = vmatprep.subr.mxu0 0.0
    %92 = vmatpush1.msra.mxu0 %v69
    %93 = vmatprep.subr.mxu0 0.0
    %94 = vmatpush1.msra.mxu0 %v68
    %95 = vmatprep.subr.mxu0 0.0
    %96 = vmatpush1.msra.mxu0 %v67
    %97 = vmatprep.subr.mxu0 0.0
    %98 = vmatpush1.msra.mxu0 %v66
    %99 = vmatprep.subr.mxu0 0.0
    %100 = vmatpush1.msra.mxu0 %v65
    %101 = vmatprep.subr.mxu0 0.0
    %102 = vmatpush1.msra.mxu0 %v64
    %103 = vmatprep.subr.mxu0 0.0
    %104 = vmatpush1.msra.mxu0 %v63
    %105 = vmatprep.subr.mxu0 0.0
    %106 = vmatpush1.msra.mxu0 %v62
    %107 = vmatprep.subr.mxu0 0.0
    %108 = vmatpush1.msra.mxu0 %v61
    %109 = vmatprep.subr.mxu0 0.0
    %110 = vmatpush2.msra.mxu0 0.0
    %111 = vmatprep.subr.mxu0 0.0
    %112 = vmatpush2.msra.mxu0 0.0
    %113 = vmatprep.subr.mxu0 0.0
    %114 = vmatpush2.msra.mxu0 0.0
    %115 = vmatprep.subr.mxu0 0.0
    %116 = vmatpush2.msra.mxu0 0.0
    %117 = vmatprep.subr.mxu0 0.0
    %118 = vmatpush2.msra.mxu0 0.0
    %119 = vmatprep.subr.mxu0 0.0
    %120 = vmatpush2.msra.mxu0 0.0
    %121 = vmatprep.subr.mxu0 0.0
    %122 = vmatpush2.msra.mxu0 0.0
    %123 = vmatprep.subr.mxu0 0.0
    %124 = vmatpush2.msra.mxu0 0.0
    %125 = vmatprep.subr.mxu0 0.0
    %126 = vmatpush2.msra.mxu0 0.0
    %127 = vmatprep.subr.mxu0 0.0
    %128 = vmatpush2.msra.mxu0 0.0
    %129 = vmatprep.subr.mxu0 0.0
    %130 = vmatpush2.msra.mxu0 0.0
    %131 = vmatprep.subr.mxu0 0.0
    %132 = vmatpush2.msra.mxu0 0.0
    %133 = vmatprep.subr.mxu0 0.0
    %134 = vmatpush2.msra.mxu0 0.0
    %135 = vmatprep.subr.mxu0 0.0
    %136 = vmatpush2.msra.mxu0 0.0
    %137 = vmatprep.subr.mxu0 0.0
    %138 = vmatpush2.msra.mxu0 0.0
    %139 = vmatprep.subr.mxu0 0.0
    %140 = vmatpush2.msra.mxu0 0.0
    %141 = vmatprep.mubr.f32.mxu0 0.0
    %142 = vmatmul.mubr.f32.gmra.mxu0 %v59
    %v143 = vpop.f32.mrf.mxu0
    %v144 = vadd.f32 0.0, %v143
    %v145 = vpop.f32.mrf.mxu0
    %146 = vdwg.mxu0
    %v147 = vadd.f32 %v60, %v144
    %148 = vst [vmem:[#allocation2] sm:$0xff] %v147
    // Predicated region
    $region38: #{tpu_custom_call.1} parent=1 // pred_check
      %p149 = pneg %p52
    $region39: #{tpu_custom_call.1} parent=1 // pred_check_branch
      %151 = sbr.rel (%p149) target = $region41
    $region40: #{tpu_custom_call.1} parent=1 // pred_region
      %v152 = vld [vmem:[%s3] sm:$0xff]
      %v153 = vld [vmem:[#allocation2] sm:$0xff]
      %155 = vset.pattern.permute.xlu0 0
      %156 = vperm.xlu0 %155, %v152
      %v157 = vpop.permute.xlu0 %156
      %v159 = vmul.f32 %v157, %v153
      %v160 = vld [vmem:[%s4] sm:$0x1]
      %v162 = vlaneseq
      %v163 = vshrl.u32 %v162, 7
      %v164 = vsub.s32 0, %v163
      %v165 = vrot.slane %v160, %v164
      %v167 = vadd.f32 %v159, %v165
      %v168 = vmax.f32 %v167, 0.0
      %v169 = vld [vmem:[#allocation6] sm:$0xff]
      %v170 = vld [vmem:[#allocation6 + $0x8] sm:$0xff]
      %v171 = vld [vmem:[#allocation6 + $0x10] sm:$0xff]
      %v172 = vld [vmem:[#allocation6 + $0x18] sm:$0xff]
      %v173 = vld [vmem:[#allocation6 + $0x20] sm:$0xff]
      %v174 = vld [vmem:[#allocation6 + $0x28] sm:$0xff]
      %v175 = vld [vmem:[#allocation6 + $0x30] sm:$0xff]
      %v176 = vld [vmem:[#allocation6 + $0x38] sm:$0xff]
      %v177 = vld [vmem:[#allocation6 + $0x40] sm:$0xff]
      %v178 = vld [vmem:[#allocation6 + $0x48] sm:$0xff]
      %v179 = vld [vmem:[#allocation6 + $0x50] sm:$0xff]
      %v180 = vld [vmem:[#allocation6 + $0x58] sm:$0xff]
      %v181 = vld [vmem:[#allocation6 + $0x60] sm:$0xff]
      %v182 = vld [vmem:[#allocation6 + $0x68] sm:$0xff]
      %v183 = vld [vmem:[#allocation6 + $0x70] sm:$0xff]
      %v184 = vld [vmem:[#allocation6 + $0x78] sm:$0xff]
      %v185 = vld [vmem:[%s2] sm:$0xff]
      %186 = vmatprep.subr.mxu0 0.0
      %187 = vmatpush1.msra.mxu0 %v184
      %188 = vmatprep.subr.mxu0 0.0
      %189 = vmatpush1.msra.mxu0 %v183
      %190 = vmatprep.subr.mxu0 0.0
      %191 = vmatpush1.msra.mxu0 %v182
      %192 = vmatprep.subr.mxu0 0.0
      %193 = vmatpush1.msra.mxu0 %v181
      %194 = vmatprep.subr.mxu0 0.0
      %195 = vmatpush1.msra.mxu0 %v180
      %196 = vmatprep.subr.mxu0 0.0
      %197 = vmatpush1.msra.mxu0 %v179
      %198 = vmatprep.subr.mxu0 0.0
      %199 = vmatpush1.msra.mxu0 %v178
      %200 = vmatprep.subr.mxu0 0.0
      %201 = vmatpush1.msra.mxu0 %v177
      %202 = vmatprep.subr.mxu0 0.0
      %203 = vmatpush1.msra.mxu0 %v176
      %204 = vmatprep.subr.mxu0 0.0
      %205 = vmatpush1.msra.mxu0 %v175
      %206 = vmatprep.subr.mxu0 0.0
      %207 = vmatpush1.msra.mxu0 %v174
      %208 = vmatprep.subr.mxu0 0.0
      %209 = vmatpush1.msra.mxu0 %v173
      %210 = vmatprep.subr.mxu0 0.0
      %211 = vmatpush1.msra.mxu0 %v172
      %212 = vmatprep.subr.mxu0 0.0
      %213 = vmatpush1.msra.mxu0 %v171
      %214 = vmatprep.subr.mxu0 0.0
      %215 = vmatpush1.msra.mxu0 %v170
      %216 = vmatprep.subr.mxu0 0.0
      %217 = vmatpush1.msra.mxu0 %v169
      %218 = vmatprep.subr.mxu0 0.0
      %219 = vmatpush2.msra.mxu0 0.0
      %220 = vmatprep.subr.mxu0 0.0
      %221 = vmatpush2.msra.mxu0 0.0
      %222 = vmatprep.subr.mxu0 0.0
      %223 = vmatpush2.msra.mxu0 0.0
      %224 = vmatprep.subr.mxu0 0.0
      %225 = vmatpush2.msra.mxu0 0.0
      %226 = vmatprep.subr.mxu0 0.0
      %227 = vmatpush2.msra.mxu0 0.0
      %228 = vmatprep.subr.mxu0 0.0
      %229 = vmatpush2.msra.mxu0 0.0
      %230 = vmatprep.subr.mxu0 0.0
      %231 = vmatpush2.msra.mxu0 0.0
      %232 = vmatprep.subr.mxu0 0.0
      %233 = vmatpush2.msra.mxu0 0.0
      %234 = vmatprep.subr.mxu0 0.0
      %235 = vmatpush2.msra.mxu0 0.0
      %236 = vmatprep.subr.mxu0 0.0
      %237 = vmatpush2.msra.mxu0 0.0
      %238 = vmatprep.subr.mxu0 0.0
      %239 = vmatpush2.msra.mxu0 0.0
      %240 = vmatprep.subr.mxu0 0.0
      %241 = vmatpush2.msra.mxu0 0.0
      %242 = vmatprep.subr.mxu0 0.0
      %243 = vmatpush2.msra.mxu0 0.0
      %244 = vmatprep.subr.mxu0 0.0
      %245 = vmatpush2.msra.mxu0 0.0
      %246 = vmatprep.subr.mxu0 0.0
      %247 = vmatpush2.msra.mxu0 0.0
      %248 = vmatprep.subr.mxu0 0.0
      %249 = vmatpush2.msra.mxu0 0.0
      %250 = vmatprep.mubr.f32.mxu0 0.0
      %251 = vmatmul.mubr.f32.gmra.mxu0 %v168
      %v252 = vpop.f32.mrf.mxu0
      %v253 = vadd.f32 %v185, %v252
      %v254 = vpop.f32.mrf.mxu0
      %255 = vdwg.mxu0
      %v256 = vmax.f32 %v253, 0.0
      %257 = vst [vmem:[#allocation8] sm:$0xff] %v256
    $region41: #{tpu_custom_call.1} parent=1 // pred_fallthru
      _
    // Predicated region
    $region42: #{tpu_custom_call.1} parent=1 // pred_check
      _
    $region43: #{tpu_custom_call.1} parent=1 // pred_check_branch
      %259 = sbr.rel (0) target = $region45
    $region44: #{tpu_custom_call.1} parent=1 // pred_region
      %s261 = ssub.s32 128, 128
      %262 = vsyncadd [#allocation5], %s261
      %s264 = sshll.u32 [#allocation8], 4
      %s265 = int_to_ptr.vmem [resolvable:$true] %s264
      %267 = dma.vmem_to_hbm [thread:$0]  %s265, 128, %s6, [#allocation5]
    $region45: #{tpu_custom_call.1} parent=1 // pred_fallthru
      _
    // Predicated region
    $region46: #{tpu_custom_call.1} parent=1 // pred_check
      _
    $region47: #{tpu_custom_call.1} parent=1 // pred_check_branch
      %269 = sbr.rel (0) target = $region49
    $region48: #{tpu_custom_call.1} parent=1 // pred_region
      %270 = dma.done [#allocation5], 128
    $region49: #{tpu_custom_call.1} parent=1 // pred_fallthru
      _
    %271 = vsyncpa [#allocation4], 1
    %272 = vsyncpa [#allocation7], 1
    %273 = vsyncpa [#allocation5], 1

</llo_original>
